<compile_context>
chip_gen: v7x
topology: tpu7x:2x2x1
jax: 0.10.0
libtpu: 0.0.40
codegen_flags: <defaults>
</compile_context>

<pallas_src>
import functools
import math

import jax
import jax.numpy as jnp
from jax import lax
from jax.experimental import pallas as pl
from jax.experimental.pallas import tpu as pltpu


def _round_up(n, m):
    return ((n + m - 1) // m) * m


def _qkv_proj_kernel(x_ref, wqkv_ref, q_ref, k_ref, v_ref, *, dp, inv_scale):
    # One fused MXU matmul for all three projections, f32 accumulation.
    qkv = jnp.dot(x_ref[...], wqkv_ref[...], preferred_element_type=jnp.float32)
    # Slice boundaries are multiples of 128 lanes (dp is a multiple of 128).
    q_ref[...] = (qkv[:, :dp] * inv_scale).astype(q_ref.dtype)
    k_ref[...] = qkv[:, dp:2 * dp].astype(k_ref.dtype)
    v_ref[...] = qkv[:, 2 * dp:].astype(v_ref.dtype)


def _attn_kernel(q_ref, k_ref, v_ref, o_ref):
    # q_ref: (tile, dp) pre-scaled queries; k_ref / v_ref: (seq, dp) whole K / V.
    q = q_ref[...]
    k = k_ref[...]
    # scores = q @ k^T without materializing a transpose of k.
    scores = lax.dot_general(
        q, k,
        dimension_numbers=(((1,), (1,)), ((), ())),
        preferred_element_type=jnp.float32,
    )
    # Numerically-stable softmax along keys, all in f32 (matches torch dim=-1).
    m = jnp.max(scores, axis=-1, keepdims=True)
    e = jnp.exp(scores - m)
    denom = jnp.sum(e, axis=-1, keepdims=True)
    attn = e * pl.reciprocal(denom, approx=True)
    # context = attn @ v; MXU operands in the compute dtype, f32 accumulation.
    ctx = jnp.dot(attn.astype(v_ref.dtype), v_ref[...],
                  preferred_element_type=jnp.float32)
    o_ref[...] = ctx.astype(o_ref.dtype)


def self_attention_v1(x, w_query, w_key, w_value, *,
                      compute_dtype=jnp.bfloat16, q_tile=256):
    """Forward pass of SelfAttentionV1 via two Pallas TPU kernels."""
    seq, d_in = x.shape
    d_out = w_query.shape[1]
    out_dtype = x.dtype

    inv_scale = 1.0 / math.sqrt(d_out)          # keys.shape[-1] ** 0.5
    dp = _round_up(d_out, 128)                  # lane-dense head width

    # Fused + lane-padded weight matrix (d_in, 3 * dp).
    def pad_cols(w):
        return jnp.pad(w, ((0, 0), (0, dp - d_out))) if dp != d_out else w

    wqkv = jnp.concatenate(
        [pad_cols(w_query), pad_cols(w_key), pad_cols(w_value)], axis=1
    ).astype(compute_dtype)

    # Row tiling (same tile for both passes); pad seq so blocks divide evenly.
    tile = min(q_tile, _round_up(seq, 8))
    seq_pad = _round_up(seq, tile)
    x_p = x.astype(compute_dtype)
    if seq_pad != seq:
        x_p = jnp.pad(x_p, ((0, seq_pad - seq), (0, 0)))
    n_tiles = seq_pad // tile

    # ---- Pass 1: fused QKV projection (q pre-scaled by 1/sqrt(d_out)) ----
    q, k, v = pl.pallas_call(
        functools.partial(_qkv_proj_kernel, dp=dp, inv_scale=inv_scale),
        out_shape=(
            jax.ShapeDtypeStruct((seq_pad, dp), compute_dtype),
            jax.ShapeDtypeStruct((seq_pad, dp), compute_dtype),
            jax.ShapeDtypeStruct((seq_pad, dp), compute_dtype),
        ),
        grid=(n_tiles,),
        in_specs=[
            pl.BlockSpec((tile, d_in), lambda i: (i, 0)),
            pl.BlockSpec((d_in, 3 * dp), lambda i: (0, 0)),
        ],
        out_specs=(
            pl.BlockSpec((tile, dp), lambda i: (i, 0)),
            pl.BlockSpec((tile, dp), lambda i: (i, 0)),
            pl.BlockSpec((tile, dp), lambda i: (i, 0)),
        ),
        compiler_params=pltpu.CompilerParams(
            dimension_semantics=("parallel",)),
    )(x_p, wqkv)

    # Drop padded rows from K/V so padded keys never enter the softmax.
    k = k[:seq]
    v = v[:seq]

    # ---- Pass 2: softmax(q k^T) v, tiled over query rows ----
    isz = jnp.dtype(compute_dtype).itemsize
    vmem_est = (
        2 * tile * dp * isz                                # double-buffered q tiles
        + 2 * 2 * seq * dp * isz                           # resident K and V (+ slack)
        + 2 * tile * dp * jnp.dtype(out_dtype).itemsize    # out tiles
        + 2 * tile * seq_pad * 4                           # f32 score / exp temporaries
    )
    # Cap well under v7x's 64 MiB physical VMEM.
    vmem_limit = int(min(max(2 * vmem_est, 4 << 20), 48 << 20))

    ctx = pl.pallas_call(
        _attn_kernel,
        out_shape=jax.ShapeDtypeStruct((seq_pad, dp), out_dtype),
        grid=(n_tiles,),
        in_specs=[
            pl.BlockSpec((tile, dp), lambda i: (i, 0)),   # q tile (pipelined)
            pl.BlockSpec((seq, dp), lambda i: (0, 0)),    # K (VMEM-resident)
            pl.BlockSpec((seq, dp), lambda i: (0, 0)),    # V (VMEM-resident)
        ],
        out_specs=pl.BlockSpec((tile, dp), lambda i: (i, 0)),
        compiler_params=pltpu.CompilerParams(
            dimension_semantics=("parallel",),
            vmem_limit_bytes=vmem_limit,
        ),
    )(q, k, v)

    # Strip row / lane padding back to the module's (seq, d_out) output.
    return ctx[:seq, :d_out]


def reference(x, w_query, w_key, w_value):
    q = x @ w_query
    k = x @ w_key
    v = x @ w_value
    scores = q @ k.T
    w = jax.nn.softmax(scores / math.sqrt(k.shape[-1]), axis=-1)
    return w @ v


if __name__ == "__main__":
    # Small shapes consistent with the module's forward: (seq, d_in) tokens.
    seq, d_in, d_out = 8, 32, 16

    key = jax.random.PRNGKey(0)
    kx, kq, kk, kv = jax.random.split(key, 4)

    x = jax.random.normal(kx, (seq, d_in), dtype=jnp.float32)
    # torch.rand -> uniform [0, 1)
    w_query = jax.random.uniform(kq, (d_in, d_out), dtype=jnp.float32)
    w_key = jax.random.uniform(kk, (d_in, d_out), dtype=jnp.float32)
    w_value = jax.random.uniform(kv, (d_in, d_out), dtype=jnp.float32)

    expected = reference(x, w_query, w_key, w_value)

    # f32 MXU operands (reference-accurate path; approx reciprocal only).
    out_f32 = jax.block_until_ready(
        self_attention_v1(x, w_query, w_key, w_value, compute_dtype=jnp.float32))
    assert out_f32.shape == (seq, d_out)
    assert jnp.allclose(out_f32, expected, atol=1e-2, rtol=1e-2), "f32 mismatch"

    # bf16 MXU operands with f32 accumulation / f32 softmax (v6e / v7x fast path).
    out_bf16 = jax.block_until_ready(
        self_attention_v1(x, w_query, w_key, w_value, compute_dtype=jnp.bfloat16))
    assert out_bf16.shape == (seq, d_out)
    assert jnp.allclose(out_bf16, expected, atol=5e-2, rtol=5e-2), "bf16 mismatch"

    print("KERNEL_OK")
</pallas_src>

<mosaic_0001>
module attributes {stable_mosaic.version = 11 : i64} {
  func.func @_qkv_proj_kernel(%arg0: i32, %arg1: memref<8x32xf32, #tpu.memory_space<vmem>>, %arg2: memref<32x384xf32, #tpu.memory_space<vmem>>, %arg3: memref<8x128xf32, #tpu.memory_space<vmem>>, %arg4: memref<8x128xf32, #tpu.memory_space<vmem>>, %arg5: memref<8x128xf32, #tpu.memory_space<vmem>>) attributes {dimension_semantics = [#tpu.dimension_semantics<parallel>], iteration_bounds = array<i64: 1>, scalar_prefetch = 0 : i64, scratch_operands = 0 : i64, tpu.core_type = #tpu.core_type<tc>, window_params = [{transform_indices = @transform_0, window_bounds = array<i64: 8, 32>}, {pipeline_mode = #tpu.pipeline_mode<synchronous>, transform_indices = @transform_1, window_bounds = array<i64: 32, 384>}, {transform_indices = @transform_2, window_bounds = array<i64: 8, 128>}, {transform_indices = @transform_3, window_bounds = array<i64: 8, 128>}, {transform_indices = @transform_4, window_bounds = array<i64: 8, 128>}]} {
    %c0 = arith.constant 0 : index
    %c0_0 = arith.constant 0 : index
    %0 = vector.load %arg1[%c0, %c0_0] : memref<8x32xf32, #tpu.memory_space<vmem>>, vector<8x32xf32>
    %c0_1 = arith.constant 0 : index
    %c0_2 = arith.constant 0 : index
    %1 = vector.load %arg2[%c0_1, %c0_2] : memref<32x384xf32, #tpu.memory_space<vmem>>, vector<32x384xf32>
    %cst = arith.constant dense<0.000000e+00> : vector<8x384xf32>
    %2 = tpu.matmul %0, %1, %cst {dimension_numbers = #tpu.dot_dimension_numbers<[1], [0], [0], [1], [0, 0, 1, 1], [], []>} : vector<8x32xf32>, vector<32x384xf32>, vector<8x384xf32> -> vector<8x384xf32>
    %3 = vector.extract_strided_slice %2 {offsets = [0, 0], sizes = [8, 128], strides = [1, 1]} : vector<8x384xf32> to vector<8x128xf32>
    %cst_3 = arith.constant 2.500000e-01 : f32
    %4 = vector.broadcast %cst_3 : f32 to vector<8x128xf32>
    %5 = arith.mulf %3, %4 : vector<8x128xf32>
    %c0_4 = arith.constant 0 : index
    %c0_5 = arith.constant 0 : index
    %6 = vector.load %arg3[%c0_4, %c0_5] : memref<8x128xf32, #tpu.memory_space<vmem>>, vector<8x128xf32>
    tpu.vector_store %arg3[%c0_4, %c0_5], %5 {strides = array<i32>} : memref<8x128xf32, #tpu.memory_space<vmem>>, vector<8x128xf32>,
    %7 = vector.extract_strided_slice %2 {offsets = [0, 128], sizes = [8, 128], strides = [1, 1]} : vector<8x384xf32> to vector<8x128xf32>
    %c0_6 = arith.constant 0 : index
    %c0_7 = arith.constant 0 : index
    %8 = vector.load %arg4[%c0_6, %c0_7] : memref<8x128xf32, #tpu.memory_space<vmem>>, vector<8x128xf32>
    tpu.vector_store %arg4[%c0_6, %c0_7], %7 {strides = array<i32>} : memref<8x128xf32, #tpu.memory_space<vmem>>, vector<8x128xf32>,
    %9 = vector.extract_strided_slice %2 {offsets = [0, 256], sizes = [8, 128], strides = [1, 1]} : vector<8x384xf32> to vector<8x128xf32>
    %c0_8 = arith.constant 0 : index
    %c0_9 = arith.constant 0 : index
    %10 = vector.load %arg5[%c0_8, %c0_9] : memref<8x128xf32, #tpu.memory_space<vmem>>, vector<8x128xf32>
    tpu.vector_store %arg5[%c0_8, %c0_9], %9 {strides = array<i32>} : memref<8x128xf32, #tpu.memory_space<vmem>>, vector<8x128xf32>,
    return
  }
  func.func @transform_0(%arg0: i32) -> (i32, i32) {
    %c0_i32 = arith.constant 0 : i32
    %c0_i32_0 = arith.constant 0 : i32
    return %arg0, %c0_i32 : i32, i32
  }
  func.func @transform_1(%arg0: i32) -> (i32, i32) {
    %c0_i32 = arith.constant 0 : i32
    %c0_i32_0 = arith.constant 0 : i32
    %c0_i32_1 = arith.constant 0 : i32
    return %c0_i32, %c0_i32_0 : i32, i32
  }
  func.func @transform_2(%arg0: i32) -> (i32, i32) {
    %c0_i32 = arith.constant 0 : i32
    %c0_i32_0 = arith.constant 0 : i32
    return %arg0, %c0_i32 : i32, i32
  }
  func.func @transform_3(%arg0: i32) -> (i32, i32) {
    %c0_i32 = arith.constant 0 : i32
    %c0_i32_0 = arith.constant 0 : i32
    return %arg0, %c0_i32 : i32, i32
  }
  func.func @transform_4(%arg0: i32) -> (i32, i32) {
    %c0_i32 = arith.constant 0 : i32
    %c0_i32_0 = arith.constant 0 : i32
    return %arg0, %c0_i32 : i32, i32
  }
}

</mosaic_0001>

<llo_original>
// kernel: tpu_custom_call.1
$region0: #{tpu_custom_call.1}
  #allocation0 [shape = 'u32[]', space=smem, size = 0x4, offset = 0x4, fixed_abs, tag = 'smem constant byte address 0x4 - core index']
  #allocation1 [shape = 'u32[144,128]{1,0:T(1,128)}', space=vmem, size = 0x12000, scoped, tag = 'internal scratch']
  %s0 = inlined_call_operand.hbm [shape: f32[8,32], index: 0, kind: input, shape index: {}]
  %s1 = inlined_call_operand.hbm [shape: f32[32,384], index: 1, kind: input, shape index: {}]
  %s2 = inlined_call_operand.hbm [shape: f32[8,128], index: 2, kind: output, shape index: {0}]
  %s3 = inlined_call_operand.hbm [shape: f32[8,128], index: 3, kind: output, shape index: {1}]
  %s4 = inlined_call_operand.hbm [shape: f32[8,128], index: 4, kind: output, shape index: {2}]
  %5 = xla_tuple %s2, %s3, %s4
  %s6 = sld [smem:[#allocation0]]
  $region42: #{tpu_custom_call.1} parent=0
    _
  %s8 = ssub.s32 1, %s6
  %s9 = scalar_select 0, %s8, %s6
  $region1: #{tpu_custom_call.1} parent=0
    #allocation2 [shape = 'u8[4096]{0}', space=vmem, size = 0x1000, scoped, tag = 'input window, operand 0, single buffered']
    #allocation3 [shape = 's32[1]{0}', space=sflag, size = 0x4, scoped, tag = 'scoped memory for tpu_custom_call.1']
    #allocation4 [shape = 's32[1]{0}', space=sflag, size = 0x4, scoped, tag = 'scoped memory for tpu_custom_call.1']
    #allocation5 [shape = 'u8[49152]{0}', space=vmem, size = 0xc000, scoped, tag = 'input window, operand 1, single buffered']
    #allocation6 [shape = 's32[1]{0}', space=sflag, size = 0x4, scoped, tag = 'scoped memory for tpu_custom_call.1']
    #allocation7 [shape = 'u8[4096]{0}', space=vmem, size = 0x1000, scoped, tag = 'output window, operand 0, single buffered']
    #allocation8 [shape = 'u8[4096]{0}', space=vmem, size = 0x1000, scoped, tag = 'output window, operand 1, single buffered']
    #allocation9 [shape = 's32[1]{0}', space=sflag, size = 0x4, scoped, tag = 'scoped memory for tpu_custom_call.1']
    #allocation10 [shape = 'u8[4096]{0}', space=vmem, size = 0x1000, scoped, tag = 'output window, operand 2, single buffered']
    %10 = vsyncpa [#allocation3], 0
    %11 = vsyncpa [#allocation6], 0
    %12 = vsyncpa [#allocation4], 0
    %13 = vsyncpa [#allocation9], 0
    // Predicated region
    $region2: #{tpu_custom_call.1} parent=1 // pred_check
      _
    $region3: #{tpu_custom_call.1} parent=1 // pred_check_branch
      %15 = sbr.rel (0) target = $region5
    $region4: #{tpu_custom_call.1} parent=1 // pred_region
      %s17 = ssub.s32 128, 128
      %18 = vsyncadd [#allocation3], %s17
      %s20 = sshll.u32 [#allocation2], 4
      %s21 = int_to_ptr.vmem [resolvable:$true] %s20
      %23 = dma.hbm_to_vmem [thread:$0]  %s0, 128, %s21, [#allocation3]
    $region5: #{tpu_custom_call.1} parent=1 // pred_fallthru
      _
    // Predicated region
    $region6: #{tpu_custom_call.1} parent=1 // pred_check
      _
    $region7: #{tpu_custom_call.1} parent=1 // pred_check_branch
      %25 = sbr.rel (0) target = $region9
    $region8: #{tpu_custom_call.1} parent=1 // pred_region
      %s27 = ssub.s32 1536, 1536
      %28 = vsyncadd [#allocation6], %s27
      %s29 = sshll.u32 [#allocation5], 4
      %s30 = int_to_ptr.vmem [resolvable:$true] %s29
      %35 = dma.hbm_to_vmem [thread:$0]  %s1, 1536, %s30, [#allocation6], 384, 384, 24
    $region9: #{tpu_custom_call.1} parent=1 // pred_fallthru
      _
    // Predicated region
    $region10: #{tpu_custom_call.1} parent=1 // pred_check
      _
    $region11: #{tpu_custom_call.1} parent=1 // pred_check_branch
      %37 = sbr.rel (0) target = $region13
    $region12: #{tpu_custom_call.1} parent=1 // pred_region
      %38 = dma.done [#allocation3], 128
    $region13: #{tpu_custom_call.1} parent=1 // pred_fallthru
      _
    // Predicated region
    $region14: #{tpu_custom_call.1} parent=1 // pred_check
      _
    $region15: #{tpu_custom_call.1} parent=1 // pred_check_branch
      %40 = sbr.rel (0) target = $region17
    $region16: #{tpu_custom_call.1} parent=1 // pred_region
      %41 = dma.done [#allocation6], 1536
    $region17: #{tpu_custom_call.1} parent=1 // pred_fallthru
      _
    %v42 = vld [vmem:[#allocation2] sm:$0xff]
    %v43 = vld [vmem:[#allocation5] sm:$0xff]
    %v44 = vld [vmem:[#allocation5 + $0x8] sm:$0xff]
    %v45 = vld [vmem:[#allocation5 + $0x10] sm:$0xff]
    %v46 = vld [vmem:[#allocation5 + $0x18] sm:$0xff]
    %v47 = vld [vmem:[#allocation5 + $0x20] sm:$0xff]
    %v48 = vld [vmem:[#allocation5 + $0x28] sm:$0xff]
    %v49 = vld [vmem:[#allocation5 + $0x30] sm:$0xff]
    %v50 = vld [vmem:[#allocation5 + $0x38] sm:$0xff]
    %v51 = vld [vmem:[#allocation5 + $0x40] sm:$0xff]
    %v52 = vld [vmem:[#allocation5 + $0x48] sm:$0xff]
    %v53 = vld [vmem:[#allocation5 + $0x50] sm:$0xff]
    %v54 = vld [vmem:[#allocation5 + $0x58] sm:$0xff]
    %vm55 = vcmask 261120
    %v57 = vsel %vm55, %v42, 0
    %59 = vmatprep.subr.mxu0 %v44
    %60 = vmatpush1.msra.mxu0 %v43
    %61 = vmatprep.subr.mxu0 %v47
    %62 = vmatpush1.msra.mxu0 %v46
    %63 = vmatprep.subr.mxu0 %v50
    %64 = vmatpush1.msra.mxu0 %v49
    %65 = vmatprep.subr.mxu0 %v53
    %66 = vmatpush1.msra.mxu0 %v52
    %67 = vmatprep.subr.mxu0 0.0
    %68 = vmatpush1.msra.mxu0 0.0
    %69 = vmatprep.subr.mxu0 0.0
    %70 = vmatpush1.msra.mxu0 0.0
    %71 = vmatprep.subr.mxu0 0.0
    %72 = vmatpush1.msra.mxu0 0.0
    %73 = vmatprep.subr.mxu0 0.0
    %74 = vmatpush1.msra.mxu0 0.0
    %75 = vmatprep.subr.mxu0 0.0
    %76 = vmatpush1.msra.mxu0 0.0
    %77 = vmatprep.subr.mxu0 0.0
    %78 = vmatpush1.msra.mxu0 0.0
    %79 = vmatprep.subr.mxu0 0.0
    %80 = vmatpush1.msra.mxu0 0.0
    %81 = vmatprep.subr.mxu0 0.0
    %82 = vmatpush1.msra.mxu0 0.0
    %83 = vmatprep.subr.mxu0 0.0
    %84 = vmatpush1.msra.mxu0 0.0
    %85 = vmatprep.subr.mxu0 0.0
    %86 = vmatpush1.msra.mxu0 0.0
    %87 = vmatprep.subr.mxu0 0.0
    %88 = vmatpush1.msra.mxu0 0.0
    %89 = vmatprep.subr.mxu0 0.0
    %90 = vmatpush1.msra.mxu0 0.0
    %91 = vmatprep.subr.mxu0 0.0
    %92 = vmatpush1.msra.mxu0 0.0
    %93 = vmatprep.subr.mxu0 0.0
    %94 = vmatpush1.msra.mxu0 0.0
    %95 = vmatprep.subr.mxu0 0.0
    %96 = vmatpush1.msra.mxu0 0.0
    %97 = vmatprep.subr.mxu0 0.0
    %98 = vmatpush1.msra.mxu0 0.0
    %99 = vmatprep.subr.mxu0 0.0
    %100 = vmatpush1.msra.mxu0 0.0
    %101 = vmatprep.subr.mxu0 0.0
    %102 = vmatpush1.msra.mxu0 0.0
    %103 = vmatprep.subr.mxu0 0.0
    %104 = vmatpush1.msra.mxu0 0.0
    %105 = vmatprep.subr.mxu0 0.0
    %106 = vmatpush1.msra.mxu0 0.0
    %107 = vmatprep.subr.mxu0 0.0
    %108 = vmatpush1.msra.mxu0 0.0
    %109 = vmatprep.subr.mxu0 0.0
    %110 = vmatpush1.msra.mxu0 0.0
    %111 = vmatprep.subr.mxu0 0.0
    %112 = vmatpush1.msra.mxu0 0.0
    %113 = vmatprep.subr.mxu0 0.0
    %114 = vmatpush1.msra.mxu0 0.0
    %115 = vmatprep.subr.mxu0 0.0
    %116 = vmatpush1.msra.mxu0 0.0
    %117 = vmatprep.subr.mxu0 0.0
    %118 = vmatpush1.msra.mxu0 0.0
    %119 = vmatprep.subr.mxu0 0.0
    %120 = vmatpush1.msra.mxu0 0.0
    %121 = vmatprep.subr.mxu0 0.0
    %122 = vmatpush1.msra.mxu0 0.0
    %123 = vmatprep.mubr.f32.mxu0 0.0
    %124 = vmatmul.mubr.f32.gmra.mrb[0].mxu0 %v57
    %v125 = vpop.f32.mrb[0].mxu0
    %v126 = vadd.f32 0.0, %v125
    %v127 = vpop.f32.mrb[0].mxu0
    %v128 = vadd.f32 0.0, %v127
    %129 = vdwg.mxu0
    %130 = vmatprep.subr.mxu0 0.0
    %131 = vmatpush1.msra.mxu0 %v45
    %132 = vmatprep.subr.mxu0 0.0
    %133 = vmatpush1.msra.mxu0 %v48
    %134 = vmatprep.subr.mxu0 0.0
    %135 = vmatpush1.msra.mxu0 %v51
    %136 = vmatprep.subr.mxu0 0.0
    %137 = vmatpush1.msra.mxu0 %v54
    %138 = vmatprep.subr.mxu0 0.0
    %139 = vmatpush1.msra.mxu0 0.0
    %140 = vmatprep.subr.mxu0 0.0
    %141 = vmatpush1.msra.mxu0 0.0
    %142 = vmatprep.subr.mxu0 0.0
    %143 = vmatpush1.msra.mxu0 0.0
    %144 = vmatprep.subr.mxu0 0.0
    %145 = vmatpush1.msra.mxu0 0.0
    %146 = vmatprep.subr.mxu0 0.0
    %147 = vmatpush1.msra.mxu0 0.0
    %148 = vmatprep.subr.mxu0 0.0
    %149 = vmatpush1.msra.mxu0 0.0
    %150 = vmatprep.subr.mxu0 0.0
    %151 = vmatpush1.msra.mxu0 0.0
    %152 = vmatprep.subr.mxu0 0.0
    %153 = vmatpush1.msra.mxu0 0.0
    %154 = vmatprep.subr.mxu0 0.0
    %155 = vmatpush1.msra.mxu0 0.0
    %156 = vmatprep.subr.mxu0 0.0
    %157 = vmatpush1.msra.mxu0 0.0
    %158 = vmatprep.subr.mxu0 0.0
    %159 = vmatpush1.msra.mxu0 0.0
    %160 = vmatprep.subr.mxu0 0.0
    %161 = vmatpush1.msra.mxu0 0.0
    %162 = vmatprep.subr.mxu0 0.0
    %163 = vmatpush1.msra.mxu0 0.0
    %164 = vmatprep.subr.mxu0 0.0
    %165 = vmatpush1.msra.mxu0 0.0
    %166 = vmatprep.subr.mxu0 0.0
    %167 = vmatpush1.msra.mxu0 0.0
    %168 = vmatprep.subr.mxu0 0.0
    %169 = vmatpush1.msra.mxu0 0.0
    %170 = vmatprep.subr.mxu0 0.0
    %171 = vmatpush1.msra.mxu0 0.0
    %172 = vmatprep.subr.mxu0 0.0
    %173 = vmatpush1.msra.mxu0 0.0
    %174 = vmatprep.subr.mxu0 0.0
    %175 = vmatpush1.msra.mxu0 0.0
    %176 = vmatprep.subr.mxu0 0.0
    %177 = vmatpush1.msra.mxu0 0.0
    %178 = vmatprep.subr.mxu0 0.0
    %179 = vmatpush1.msra.mxu0 0.0
    %180 = vmatprep.subr.mxu0 0.0
    %181 = vmatpush1.msra.mxu0 0.0
    %182 = vmatprep.subr.mxu0 0.0
    %183 = vmatpush1.msra.mxu0 0.0
    %184 = vmatprep.subr.mxu0 0.0
    %185 = vmatpush1.msra.mxu0 0.0
    %186 = vmatprep.subr.mxu0 0.0
    %187 = vmatpush1.msra.mxu0 0.0
    %188 = vmatprep.subr.mxu0 0.0
    %189 = vmatpush1.msra.mxu0 0.0
    %190 = vmatprep.subr.mxu0 0.0
    %191 = vmatpush1.msra.mxu0 0.0
    %192 = vmatprep.subr.mxu0 0.0
    %193 = vmatpush1.msra.mxu0 0.0
    %194 = vmatprep.mubr.f32.mxu0 0.0
    %195 = vmatmul.mubr.f32.gmra.mrb[0].mxu0 %v57
    %v196 = vpop.f32.mrb[0].mxu0
    %v197 = vadd.f32 0.0, %v196
    %v198 = vpop.f32.mrb[0].mxu0
    %199 = vdwg.mxu0
    %v200 = vmul.f32 %v126, 0.25
    %201 = vst [vmem:[#allocation7] sm:$0xff] %v200
    %202 = vst [vmem:[#allocation8] sm:$0xff] %v128
    %203 = vst [vmem:[#allocation10] sm:$0xff] %v197
    // Predicated region
    $region18: #{tpu_custom_call.1} parent=1 // pred_check
      _
    $region19: #{tpu_custom_call.1} parent=1 // pred_check_branch
      %205 = sbr.rel (0) target = $region21
    $region20: #{tpu_custom_call.1} parent=1 // pred_region
      %s207 = ssub.s32 128, 128
      %208 = vsyncadd [#allocation4], %s207
      %s210 = sshll.u32 [#allocation7], 4
      %s211 = int_to_ptr.vmem [resolvable:$true] %s210
      %213 = dma.vmem_to_hbm [thread:$0]  %s211, 128, %s2, [#allocation4]
    $region21: #{tpu_custom_call.1} parent=1 // pred_fallthru
      _
    // Predicated region
    $region22: #{tpu_custom_call.1} parent=1 // pred_check
      _
    $region23: #{tpu_custom_call.1} parent=1 // pred_check_branch
      %215 = sbr.rel (0) target = $region25
    $region24: #{tpu_custom_call.1} parent=1 // pred_region
      %s217 = ssub.s32 128, 128
      %218 = vsyncadd [#allocation9], %s217
      %s220 = sshll.u32 [#allocation8], 4
      %s221 = int_to_ptr.vmem [resolvable:$true] %s220
      %223 = dma.vmem_to_hbm [thread:$0]  %s221, 128, %s3, [#allocation9]
    $region25: #{tpu_custom_call.1} parent=1 // pred_fallthru
      _
    // Predicated region
    $region26: #{tpu_custom_call.1} parent=1 // pred_check
      _
    $region27: #{tpu_custom_call.1} parent=1 // pred_check_branch
      %225 = sbr.rel (0) target = $region29
    $region28: #{tpu_custom_call.1} parent=1 // pred_region
      %s227 = ssub.s32 128, 128
      %228 = vsyncadd [#allocation9], %s227
      %s230 = sshll.u32 [#allocation10], 4
      %s231 = int_to_ptr.vmem [resolvable:$true] %s230
      %233 = dma.vmem_to_hbm [thread:$0]  %s231, 128, %s4, [#allocation9]
    $region29: #{tpu_custom_call.1} parent=1 // pred_fallthru
      _
    // Predicated region
    $region30: #{tpu_custom_call.1} parent=1 // pred_check
      _
    $region31: #{tpu_custom_call.1} parent=1 // pred_check_branch
      %235 = sbr.rel (0) target = $region33
    $region32: #{tpu_custom_call.1} parent=1 // pred_region
      %236 = dma.done [#allocation4], 128
    $region33: #{tpu_custom_call.1} parent=1 // pred_fallthru
      _
    // Predicated region
    $region34: #{tpu_custom_call.1} parent=1 // pred_check
      _
    $region35: #{tpu_custom_call.1} parent=1 // pred_check_branch
      %238 = sbr.rel (0) target = $region37
    $region36: #{tpu_custom_call.1} parent=1 // pred_region
      %239 = dma.done [#allocation9], 128
    $region37: #{tpu_custom_call.1} parent=1 // pred_fallthru
      _
    // Predicated region
    $region38: #{tpu_custom_call.1} parent=1 // pred_check
      _
    $region39: #{tpu_custom_call.1} parent=1 // pred_check_branch
      %241 = sbr.rel (0) target = $region41
    $region40: #{tpu_custom_call.1} parent=1 // pred_region
      %242 = dma.done [#allocation9], 128
    $region41: #{tpu_custom_call.1} parent=1 // pred_fallthru
      _
    %243 = vsyncpa [#allocation3], 1
    %244 = vsyncpa [#allocation6], 1
    %245 = vsyncpa [#allocation4], 1
    %246 = vsyncpa [#allocation9], 1

</llo_original>
